<compile_context>
chip_gen: v5e
topology: v5e:2x2
jax: 0.10.0
libtpu: 0.0.40
codegen_flags: <defaults>
</compile_context>

<pallas_src>
import jax
import jax.numpy as jnp
from jax.experimental import pallas as pl
from jax.experimental.pallas import tpu as pltpu

_SUB_TILE = 8  # batch rows processed per inner-loop step (one f32 sublane tile)


def sparse_embedding_kernel(idx_ref, proj_ref, b_ref, out_ref):
    """Single invocation over the whole (padded) batch.

    idx_ref  : (B_pad, S)     int32  VMEM  -- token indices
    proj_ref : (1, N_pad)     f32    VMEM  -- compact projected table (E @ w)
    b_ref    : (1, 1)         f32    SMEM  -- linear bias
    out_ref  : (B_pad, 128)   f32    VMEM  -- result broadcast across lanes
    """
    b_pad, seq_len = idx_ref.shape
    n_pad = proj_ref.shape[1]
    tb = _SUB_TILE

    bias = b_ref[0, 0]
    inv_s = jnp.float32(1.0 / seq_len)

    # Hoisted loop invariants (lane iota + sublane-broadcast projection row).
    iota_n = jax.lax.broadcasted_iota(jnp.int32, (tb, n_pad), 1)   # (8, N_pad)
    proj_b = jnp.broadcast_to(proj_ref[...], (tb, n_pad))          # (8, N_pad)

    def body(t, carry):
        r0 = pl.multiple_of(t * tb, tb)
        idx_t = idx_ref[pl.ds(r0, tb), :]                          # (8, S) int32

        # acc[b, n] = proj[n] * #{s : idx[b, s] == n}  (fused select-accumulate,
        # no counts array, no int->f32 converts).
        acc = jnp.zeros((tb, n_pad), jnp.float32)
        for s in range(seq_len):                                   # S is tiny: static unroll
            sel = iota_n == idx_t[:, s:s + 1]                      # (8, N_pad) lane-bcast cmp
            acc = acc + jnp.where(sel, proj_b, 0.0)

        # XLU lane reduction -> (8, 1), then mean scale + bias.
        row = jnp.sum(acc, axis=-1, keepdims=True) * inv_s + bias  # (8, 1)

        # Lane-dense unmasked store; wrapper slices column 0.
        out_ref[pl.ds(r0, tb), :] = jnp.broadcast_to(row, (tb, 128))
        return carry

    # Rolled loop bounds live ranges (~40 vregs peak); 4 iterations at B=32.
    jax.lax.fori_loop(0, b_pad // tb, body, 0)


def sparse_embedding_forward(x_idx, emb_table, w, b):
    """x_idx: (B, S) int, emb_table: (N, D) f32, w: (D, 1) f32, b: (1, 1) f32."""
    B, S = x_idx.shape
    N, _ = emb_table.shape

    n_pad = pl.cdiv(N, 128) * 128          # 1000 -> 1024: full unmasked lane vregs
    b_pad = pl.cdiv(B, _SUB_TILE) * _SUB_TILE

    # Fold the Linear weight into the embedding table: compact (1, N_pad) row.
    proj = jnp.dot(emb_table.astype(jnp.float32), w.astype(jnp.float32),
                   preferred_element_type=jnp.float32)              # (N, 1)
    proj_row = jnp.pad(proj.T, ((0, 0), (0, n_pad - N)))             # (1, N_pad)

    idx = x_idx.astype(jnp.int32)
    if b_pad != B:
        idx = jnp.pad(idx, ((0, b_pad - B), (0, 0)))                 # pad rows use index 0

    b_smem = jnp.asarray(b, jnp.float32).reshape(1, 1)

    out_slab = pl.pallas_call(
        sparse_embedding_kernel,
        out_shape=jax.ShapeDtypeStruct((b_pad, 128), jnp.float32),
        in_specs=[
            pl.BlockSpec(memory_space=pltpu.MemorySpace.VMEM),   # indices (untiled, 640 B)
            pl.BlockSpec(memory_space=pltpu.MemorySpace.VMEM),   # compact proj row (~4 KB)
            pl.BlockSpec(memory_space=pltpu.MemorySpace.SMEM),   # bias scalar
        ],
        out_specs=pl.BlockSpec(memory_space=pltpu.MemorySpace.VMEM),
    )(idx, proj_row, b_smem)

    # Only lane 0 of each output row is meaningful; drop padded batch rows.
    return out_slab[:B, :1]


if __name__ == "__main__":
    num_embeddings = 1000
    embedding_dim = 10
    batch_size = 32
    seq_len = 5

    key = jax.random.PRNGKey(0)
    k_idx, k_emb, k_w, k_b = jax.random.split(key, 4)

    # Deterministic parameter init (matches PyTorch init distributions):
    # nn.Embedding: N(0, 1); nn.Linear: U(-1/sqrt(fan_in), 1/sqrt(fan_in))
    emb_table = jax.random.normal(k_emb, (num_embeddings, embedding_dim), jnp.float32)
    bound = 1.0 / (embedding_dim ** 0.5)
    w = jax.random.uniform(k_w, (embedding_dim, 1), jnp.float32, -bound, bound)
    b = jax.random.uniform(k_b, (1, 1), jnp.float32, -bound, bound)

    # Example input indices: (B, S) in [0, num_embeddings)
    x = jax.random.randint(k_idx, (batch_size, seq_len), 0, num_embeddings, jnp.int32)

    out = sparse_embedding_forward(x, emb_table, w, b)
    out = jax.block_until_ready(out)

    # Pure-JAX reference check (unfolded formulation).
    ref = jnp.mean(emb_table[x], axis=1) @ w + b
    assert out.shape == (batch_size, 1)
    assert jnp.allclose(out, ref, atol=1e-5, rtol=1e-5)

    print("KERNEL_OK")
</pallas_src>

<mosaic_0001>
module attributes {stable_mosaic.version = 11 : i64} {
  func.func @sparse_embedding_kernel(%arg0: memref<32x5xi32, #tpu.memory_space<vmem>>, %arg1: memref<1x1024xf32, #tpu.memory_space<vmem>>, %arg2: memref<1x1xf32, #tpu.memory_space<smem>>, %arg3: memref<32x128xf32, #tpu.memory_space<vmem>>) attributes {dimension_semantics = [], scalar_prefetch = 0 : i64, scratch_operands = 0 : i64, tpu.core_type = #tpu.core_type<tc>} {
    %c0 = arith.constant 0 : index
    %c0_0 = arith.constant 0 : index
    %0 = memref.load %arg2[%c0, %c0_0] : memref<1x1xf32, #tpu.memory_space<smem>>
    %1 = tpu.iota {dimensions = array<i32: 1>} : vector<8x1024xi32>
    %c0_1 = arith.constant 0 : index
    %c0_2 = arith.constant 0 : index
    %2 = vector.load %arg1[%c0_1, %c0_2] : memref<1x1024xf32, #tpu.memory_space<vmem>>, vector<1x1024xf32>
    %3 = vector.shape_cast %2 : vector<1x1024xf32> to vector<1x1024xf32>
    %4 = vector.broadcast %3 : vector<1x1024xf32> to vector<8x1024xf32>
    %cst = arith.constant 2.000000e-01 : f32
    %c0_i32 = arith.constant 0 : i32
    %c4_i32 = arith.constant 4 : i32
    %5 = arith.addi %c0_i32, %c4_i32 : i32
    %c1_i32 = arith.constant 1 : i32
    scf.for %arg4 = %c0_i32 to %5 step %c1_i32  : i32 {
      %c8_i32 = arith.constant 8 : i32
      %6 = arith.muli %arg4, %c8_i32 : i32
      %7 = tpu.assume_multiple %6, 8 : i32
      %8 = arith.index_cast %7 : i32 to index
      %c0_4 = arith.constant 0 : index
      %9 = vector.load %arg0[%8, %c0_4] : memref<32x5xi32, #tpu.memory_space<vmem>>, vector<8x5xi32>
      %cst_5 = arith.constant 0.000000e+00 : f32
      %10 = vector.broadcast %cst_5 : f32 to vector<8x1024xf32>
      %11 = vector.extract_strided_slice %9 {offsets = [0, 0], sizes = [8, 1], strides = [1, 1]} : vector<8x5xi32> to vector<8x1xi32>
      %12 = vector.broadcast %11 : vector<8x1xi32> to vector<8x1024xi32>
      %13 = arith.cmpi eq, %1, %12 : vector<8x1024xi32>
      %cst_6 = arith.constant 0.000000e+00 : f32
      %14 = vector.broadcast %cst_6 : f32 to vector<8x1024xf32>
      %15 = arith.select %13, %4, %14 : vector<8x1024xi1>, vector<8x1024xf32>
      %16 = arith.addf %10, %15 : vector<8x1024xf32>
      %17 = vector.extract_strided_slice %9 {offsets = [0, 1], sizes = [8, 1], strides = [1, 1]} : vector<8x5xi32> to vector<8x1xi32>
      %18 = vector.broadcast %17 : vector<8x1xi32> to vector<8x1024xi32>
      %19 = arith.cmpi eq, %1, %18 : vector<8x1024xi32>
      %cst_7 = arith.constant 0.000000e+00 : f32
      %20 = vector.broadcast %cst_7 : f32 to vector<8x1024xf32>
      %21 = arith.select %19, %4, %20 : vector<8x1024xi1>, vector<8x1024xf32>
      %22 = arith.addf %16, %21 : vector<8x1024xf32>
      %23 = vector.extract_strided_slice %9 {offsets = [0, 2], sizes = [8, 1], strides = [1, 1]} : vector<8x5xi32> to vector<8x1xi32>
      %24 = vector.broadcast %23 : vector<8x1xi32> to vector<8x1024xi32>
      %25 = arith.cmpi eq, %1, %24 : vector<8x1024xi32>
      %cst_8 = arith.constant 0.000000e+00 : f32
      %26 = vector.broadcast %cst_8 : f32 to vector<8x1024xf32>
      %27 = arith.select %25, %4, %26 : vector<8x1024xi1>, vector<8x1024xf32>
      %28 = arith.addf %22, %27 : vector<8x1024xf32>
      %29 = vector.extract_strided_slice %9 {offsets = [0, 3], sizes = [8, 1], strides = [1, 1]} : vector<8x5xi32> to vector<8x1xi32>
      %30 = vector.broadcast %29 : vector<8x1xi32> to vector<8x1024xi32>
      %31 = arith.cmpi eq, %1, %30 : vector<8x1024xi32>
      %cst_9 = arith.constant 0.000000e+00 : f32
      %32 = vector.broadcast %cst_9 : f32 to vector<8x1024xf32>
      %33 = arith.select %31, %4, %32 : vector<8x1024xi1>, vector<8x1024xf32>
      %34 = arith.addf %28, %33 : vector<8x1024xf32>
      %35 = vector.extract_strided_slice %9 {offsets = [0, 4], sizes = [8, 1], strides = [1, 1]} : vector<8x5xi32> to vector<8x1xi32>
      %36 = vector.broadcast %35 : vector<8x1xi32> to vector<8x1024xi32>
      %37 = arith.cmpi eq, %1, %36 : vector<8x1024xi32>
      %cst_10 = arith.constant 0.000000e+00 : f32
      %38 = vector.broadcast %cst_10 : f32 to vector<8x1024xf32>
      %39 = arith.select %37, %4, %38 : vector<8x1024xi1>, vector<8x1024xf32>
      %40 = arith.addf %34, %39 : vector<8x1024xf32>
      %cst_11 = arith.constant dense<0.000000e+00> : vector<8xf32>
      %41 = vector.multi_reduction <add>, %40, %cst_11 [1] : vector<8x1024xf32> to vector<8xf32>
      %42 = vector.shape_cast %41 : vector<8xf32> to vector<8x1xf32>
      %43 = vector.broadcast %cst : f32 to vector<8x1xf32>
      %44 = arith.mulf %42, %43 : vector<8x1xf32>
      %45 = vector.broadcast %0 : f32 to vector<8x1xf32>
      %46 = arith.addf %44, %45 : vector<8x1xf32>
      %47 = vector.shape_cast %46 : vector<8x1xf32> to vector<8x1xf32>
      %48 = vector.broadcast %47 : vector<8x1xf32> to vector<8x128xf32>
      %49 = arith.index_cast %7 : i32 to index
      %c0_12 = arith.constant 0 : index
      %50 = vector.load %arg3[%49, %c0_12] : memref<32x128xf32, #tpu.memory_space<vmem>>, vector<8x128xf32>
      tpu.vector_store %arg3[%49, %c0_12], %48 {strides = array<i32>} : memref<32x128xf32, #tpu.memory_space<vmem>>, vector<8x128xf32>,
    }
    %c4_i32_3 = arith.constant 4 : i32
    return
  }
}

</mosaic_0001>

<llo_original>
// kernel: tpu_custom_call.1
$region0: #{tpu_custom_call.1}
  #allocation0 [shape = 'u32[]', space=smem, size = 0x4, offset = 0x4, fixed_abs, tag = 'smem constant byte address 0x4 - core index']
  #allocation1 [shape = 'u32[72,128]{1,0:T(1,128)}', space=vmem, size = 0x9000, scoped, tag = 'internal scratch']
  #allocation2 [shape = 'f32[1,1]{1,0:T(1,128)S(6)}', space=smem, size = 0x200, scoped, tag = 'scoped memory for tpu_custom_call.1']
  %s0 = inlined_call_operand.vmem [shape: s32[32,5], index: 0, kind: input, shape index: {}]
  %s1 = inlined_call_operand.vmem [shape: f32[1,1024], index: 1, kind: input, shape index: {}]
  %s2 = inlined_call_operand.<no memory space> [shape: f32[1,1], index: 2, kind: input, shape index: {}]
  %s3 = inlined_call_operand.hbm [shape: f32[32,128], index: 3, kind: output, shape index: {}]
  %s4 = sld [smem:[#allocation0]]
  $region29: #{tpu_custom_call.1} parent=0
    _
  %s6 = ssub.s32 1, %s4
  %s7 = scalar_select 0, %s6, %s4
  %8 = sst [smem:[#allocation2]] %s2
  $region1: #{tpu_custom_call.1} parent=0
    #allocation3 [shape = 'u8[16384]{0}', space=vmem, size = 0x4000, scoped, tag = 'output window, operand 0, single buffered']
    #allocation4 [shape = 's32[1]{0}', space=sflag, size = 0x4, scoped, tag = 'scoped memory for tpu_custom_call.1']
    %9 = vsyncpa [#allocation4], 0
    // Predicated region
    $region2: #{tpu_custom_call.1} parent=1 // pred_check
      _
    $region3: #{tpu_custom_call.1} parent=1 // pred_check_branch
      %11 = sbr.rel (0) target = $region5
    $region4: #{tpu_custom_call.1} parent=1 // pred_region
      _
    $region5: #{tpu_custom_call.1} parent=1 // pred_fallthru
      _
    // Predicated region
    $region6: #{tpu_custom_call.1} parent=1 // pred_check
      _
    $region7: #{tpu_custom_call.1} parent=1 // pred_check_branch
      %13 = sbr.rel (0) target = $region9
    $region8: #{tpu_custom_call.1} parent=1 // pred_region
      _
    $region9: #{tpu_custom_call.1} parent=1 // pred_fallthru
      _
    // Predicated region
    $region10: #{tpu_custom_call.1} parent=1 // pred_check
      _
    $region11: #{tpu_custom_call.1} parent=1 // pred_check_branch
      %15 = sbr.rel (0) target = $region13
    $region12: #{tpu_custom_call.1} parent=1 // pred_region
      _
    $region13: #{tpu_custom_call.1} parent=1 // pred_fallthru
      _
    %s16 = sld [smem:[#allocation2]]
    %v17 = vlaneseq
    %v18 = vand.u32 %v17, 127
    %v19 = vadd.s32 %v18, 128
    %v20 = vadd.s32 %v18, 256
    %v21 = vadd.s32 %v18, 384
    %v22 = vadd.s32 %v18, 512
    %v23 = vadd.s32 %v18, 640
    %v24 = vadd.s32 %v18, 768
    %v25 = vadd.s32 %v18, 896
    %v26 = vld [vmem:[%s1] sm:$0xff]
    %v28 = vperm.slane %v26, 0
    %v29 = vperm.slane %v26, 1
    %v30 = vperm.slane %v26, 2
    %v31 = vperm.slane %v26, 3
    %v32 = vperm.slane %v26, 4
    %v33 = vperm.slane %v26, 5
    %v34 = vperm.slane %v26, 6
    %v35 = vperm.slane %v26, 7
    loop: start=0, step=1, limit=4
    $region14: #{tpu_custom_call.1} parent=1 // loop_pre_header
      _
    $region15: #{tpu_custom_call.1} parent=1 // loop_header
      %s45 = sphi 0, %s49
      %p46 = scmp.ge.s32.totalorder %s45, 4
    $region16: #{tpu_custom_call.1} parent=1 // loop_header_branch
      %48 = sbr.rel (%p46) target = $region20
    $region17: #{tpu_custom_call.1} parent=1 // loop_body
      %s50 = smul.u32 %s45, 8
      %s51 = scalar_lea.vmem %s0, %s50
      %v52 = vld [vmem:[%s51] sm:$0xff]
      %53 = vset.pattern.permute.xlu0 0
      %54 = vperm.xlu0 %53, %v52
      %v55 = vpop.permute.xlu0 %54
      %vm56 = vcmp.eq.s32.totalorder %v18, %v55
      %vm57 = vcmp.eq.s32.totalorder %v19, %v55
      %vm58 = vcmp.eq.s32.totalorder %v20, %v55
      %vm59 = vcmp.eq.s32.totalorder %v21, %v55
      %vm60 = vcmp.eq.s32.totalorder %v22, %v55
      %vm61 = vcmp.eq.s32.totalorder %v23, %v55
      %vm62 = vcmp.eq.s32.totalorder %v24, %v55
      %vm63 = vcmp.eq.s32.totalorder %v25, %v55
      %v64 = vsel %vm56, %v28, 0.0
      %v65 = vsel %vm57, %v29, 0.0
      %v66 = vsel %vm58, %v30, 0.0
      %v67 = vsel %vm59, %v31, 0.0
      %v68 = vsel %vm60, %v32, 0.0
      %v69 = vsel %vm61, %v33, 0.0
      %v70 = vsel %vm62, %v34, 0.0
      %v71 = vsel %vm63, %v35, 0.0
      %v72 = vadd.f32 %v64, 0.0
      %v73 = vadd.f32 %v65, 0.0
      %v74 = vadd.f32 %v66, 0.0
      %v75 = vadd.f32 %v67, 0.0
      %v76 = vadd.f32 %v68, 0.0
      %v77 = vadd.f32 %v69, 0.0
      %v78 = vadd.f32 %v70, 0.0
      %v79 = vadd.f32 %v71, 0.0
      %80 = vset.pattern.permute.xlu0 1
      %81 = vperm.xlu0 %80, %v52
      %v82 = vpop.permute.xlu0 %81
      %vm83 = vcmp.eq.s32.totalorder %v18, %v82
      %vm84 = vcmp.eq.s32.totalorder %v19, %v82
      %vm85 = vcmp.eq.s32.totalorder %v20, %v82
      %vm86 = vcmp.eq.s32.totalorder %v21, %v82
      %vm87 = vcmp.eq.s32.totalorder %v22, %v82
      %vm88 = vcmp.eq.s32.totalorder %v23, %v82
      %vm89 = vcmp.eq.s32.totalorder %v24, %v82
      %vm90 = vcmp.eq.s32.totalorder %v25, %v82
      %v91 = vsel %vm83, %v28, 0.0
      %v92 = vsel %vm84, %v29, 0.0
      %v93 = vsel %vm85, %v30, 0.0
      %v94 = vsel %vm86, %v31, 0.0
      %v95 = vsel %vm87, %v32, 0.0
      %v96 = vsel %vm88, %v33, 0.0
      %v97 = vsel %vm89, %v34, 0.0
      %v98 = vsel %vm90, %v35, 0.0
      %v99 = vadd.f32 %v72, %v91
      %v100 = vadd.f32 %v73, %v92
      %v101 = vadd.f32 %v74, %v93
      %v102 = vadd.f32 %v75, %v94
      %v103 = vadd.f32 %v76, %v95
      %v104 = vadd.f32 %v77, %v96
      %v105 = vadd.f32 %v78, %v97
      %v106 = vadd.f32 %v79, %v98
      %107 = vset.pattern.permute.xlu0 2
      %108 = vperm.xlu0 %107, %v52
      %v109 = vpop.permute.xlu0 %108
      %vm110 = vcmp.eq.s32.totalorder %v18, %v109
      %vm111 = vcmp.eq.s32.totalorder %v19, %v109
      %vm112 = vcmp.eq.s32.totalorder %v20, %v109
      %vm113 = vcmp.eq.s32.totalorder %v21, %v109
      %vm114 = vcmp.eq.s32.totalorder %v22, %v109
      %vm115 = vcmp.eq.s32.totalorder %v23, %v109
      %vm116 = vcmp.eq.s32.totalorder %v24, %v109
      %vm117 = vcmp.eq.s32.totalorder %v25, %v109
      %v118 = vsel %vm110, %v28, 0.0
      %v119 = vsel %vm111, %v29, 0.0
      %v120 = vsel %vm112, %v30, 0.0
      %v121 = vsel %vm113, %v31, 0.0
      %v122 = vsel %vm114, %v32, 0.0
      %v123 = vsel %vm115, %v33, 0.0
      %v124 = vsel %vm116, %v34, 0.0
      %v125 = vsel %vm117, %v35, 0.0
      %v126 = vadd.f32 %v99, %v118
      %v127 = vadd.f32 %v100, %v119
      %v128 = vadd.f32 %v101, %v120
      %v129 = vadd.f32 %v102, %v121
      %v130 = vadd.f32 %v103, %v122
      %v131 = vadd.f32 %v104, %v123
      %v132 = vadd.f32 %v105, %v124
      %v133 = vadd.f32 %v106, %v125
      %134 = vset.pattern.permute.xlu0 3
      %135 = vperm.xlu0 %134, %v52
      %v136 = vpop.permute.xlu0 %135
      %vm137 = vcmp.eq.s32.totalorder %v18, %v136
      %vm138 = vcmp.eq.s32.totalorder %v19, %v136
      %vm139 = vcmp.eq.s32.totalorder %v20, %v136
      %vm140 = vcmp.eq.s32.totalorder %v21, %v136
      %vm141 = vcmp.eq.s32.totalorder %v22, %v136
      %vm142 = vcmp.eq.s32.totalorder %v23, %v136
      %vm143 = vcmp.eq.s32.totalorder %v24, %v136
      %vm144 = vcmp.eq.s32.totalorder %v25, %v136
      %v145 = vsel %vm137, %v28, 0.0
      %v146 = vsel %vm138, %v29, 0.0
      %v147 = vsel %vm139, %v30, 0.0
      %v148 = vsel %vm140, %v31, 0.0
      %v149 = vsel %vm141, %v32, 0.0
      %v150 = vsel %vm142, %v33, 0.0
      %v151 = vsel %vm143, %v34, 0.0
      %v152 = vsel %vm144, %v35, 0.0
      %v153 = vadd.f32 %v126, %v145
      %v154 = vadd.f32 %v127, %v146
      %v155 = vadd.f32 %v128, %v147
      %v156 = vadd.f32 %v129, %v148
      %v157 = vadd.f32 %v130, %v149
      %v158 = vadd.f32 %v131, %v150
      %v159 = vadd.f32 %v132, %v151
      %v160 = vadd.f32 %v133, %v152
      %161 = vset.pattern.permute.xlu0 4
      %162 = vperm.xlu0 %161, %v52
      %v163 = vpop.permute.xlu0 %162
      %vm164 = vcmp.eq.s32.totalorder %v18, %v163
      %vm165 = vcmp.eq.s32.totalorder %v19, %v163
      %vm166 = vcmp.eq.s32.totalorder %v20, %v163
      %vm167 = vcmp.eq.s32.totalorder %v21, %v163
      %vm168 = vcmp.eq.s32.totalorder %v22, %v163
      %vm169 = vcmp.eq.s32.totalorder %v23, %v163
      %vm170 = vcmp.eq.s32.totalorder %v24, %v163
      %vm171 = vcmp.eq.s32.totalorder %v25, %v163
      %v172 = vsel %vm164, %v28, 0.0
      %v173 = vsel %vm165, %v29, 0.0
      %v174 = vsel %vm166, %v30, 0.0
      %v175 = vsel %vm167, %v31, 0.0
      %v176 = vsel %vm168, %v32, 0.0
      %v177 = vsel %vm169, %v33, 0.0
      %v178 = vsel %vm170, %v34, 0.0
      %v179 = vsel %vm171, %v35, 0.0
      %v180 = vadd.f32 %v153, %v172
      %v181 = vadd.f32 %v154, %v173
      %v182 = vadd.f32 %v155, %v174
      %v183 = vadd.f32 %v156, %v175
      %v184 = vadd.f32 %v157, %v176
      %v185 = vadd.f32 %v158, %v177
      %v186 = vadd.f32 %v159, %v178
      %v187 = vadd.f32 %v160, %v179
      %v188 = vadd.f32 %v180, %v181
      %v189 = vadd.f32 %v188, %v182
      %v190 = vadd.f32 %v189, %v183
      %v191 = vadd.f32 %v190, %v184
      %v192 = vadd.f32 %v191, %v185
      %v193 = vadd.f32 %v192, %v186
      %v194 = vadd.f32 %v193, %v187
      %195 = vadd.xlane.f32.xlu0 %v194
      %v196 = vpop.xlane.xlu0 %195
      %v197 = vmul.f32 %v196, 0.2
      %v198 = vstv %s16
      %v199 = vadd.f32 %v197, %v198
      %s200 = scalar_lea.vmem [#allocation3], %s50
      %201 = vst [vmem:[%s200] sm:$0xff] %v199
    $region18: #{tpu_custom_call.1} parent=1 // loop_footer
      %s49 = sadd.s32 1, %s45
    $region19: #{tpu_custom_call.1} parent=1 // loop_footer_branch
      %44 = sbr.rel target = $region15
    $region20: #{tpu_custom_call.1} parent=1 // loop_exit
      _
    // Predicated region
    $region21: #{tpu_custom_call.1} parent=1 // pred_check
      _
    $region22: #{tpu_custom_call.1} parent=1 // pred_check_branch
      %203 = sbr.rel (0) target = $region24
    $region23: #{tpu_custom_call.1} parent=1 // pred_region
      %205 = vsyncadd [#allocation4], 0
      %s206 = sshll.u32 [#allocation3], 4
      %s207 = int_to_ptr.vmem [resolvable:$true] %s206
      %s208 = sshll.u32 %s3, 4
      %s209 = int_to_ptr.hbm [resolvable:$true] %s208
      %214 = dma.vmem_to_hbm [thread:$0]  %s207, 512, %s209, [#allocation4], 128, 128, 8
    $region24: #{tpu_custom_call.1} parent=1 // pred_fallthru
      _
    // Predicated region
    $region25: #{tpu_custom_call.1} parent=1 // pred_check
      _
    $region26: #{tpu_custom_call.1} parent=1 // pred_check_branch
      %216 = sbr.rel (0) target = $region28
    $region27: #{tpu_custom_call.1} parent=1 // pred_region
      %218 = dma.done [#allocation4], 512
    $region28: #{tpu_custom_call.1} parent=1 // pred_fallthru
      _
    %219 = vsyncpa [#allocation4], 1

</llo_original>
